<compile_context>
chip_gen: v5e
topology: v5e:2x2
jax: 0.10.0
libtpu: 0.0.40
codegen_flags: <defaults>
</compile_context>

<pallas_src>
import jax
import jax.numpy as jnp
from jax.experimental import pallas as pl
from jax.experimental.pallas import tpu as pltpu


def _round_up(x, m):
    return (x + m - 1) // m * m


def _attn_kernel(x_ref, w1b_ref, b1b_ref, w2b_ref, exp_ref, sum_ref, out_ref):
    # x_ref : (TM, N*H)   lane-dense input slab
    # w1b   : (N*H, N*A)  block-diagonal first linear (one W1 block per num slot)
    # b1b   : (1, N*A)    tiled bias
    # w2b   : (N*A, N)    block second linear == fused lane-group reduction
    # exp   : (N, N*H)    weight -> lane expansion operator
    # sum   : (N*H, H)    weighted reduction over num
    x = x_ref[...]

    # Linear(H->A) + ReLU for all num slots at once (lane-dense MXU matmul).
    h = jnp.dot(x, w1b_ref[...], preferred_element_type=jnp.float32) + b1b_ref[...]
    h = jnp.maximum(h, 0.0)

    # Linear(A->1) per num slot -> energies (TM, N).  (b2 omitted: constant
    # shift before softmax, cancels exactly.)
    e = jnp.dot(h, w2b_ref[...], preferred_element_type=jnp.float32)

    # softmax over the num axis
    e = e - jnp.max(e, axis=-1, keepdims=True)
    p = jnp.exp(e)
    w = p * pl.reciprocal(jnp.sum(p, axis=-1, keepdims=True), approx=True)

    # broadcast weights across the H lanes of each num block, then reduce num.
    wl = jnp.dot(w, exp_ref[...], preferred_element_type=jnp.float32)      # (TM, N*H)
    out = jnp.dot(x * wl, sum_ref[...], preferred_element_type=jnp.float32)  # (TM, H)
    out_ref[...] = out.astype(out_ref.dtype)


def attn_layer(x, w1, b1, w2, b2=None, *, tile_m=512):
    """x: (B, L, num, H) float32 -> (B, L, H) float32.  b2 unused (cancels)."""
    B, L, N, H = x.shape
    A = w1.shape[1]
    M = B * L
    dt = x.dtype

    # lane-dense input layout: (M, N*H); with N*H == 128 this fills full vregs.
    xf = x.reshape(M, N * H)

    # Tiny constant operators (built once in the wrapper) that keep every
    # in-kernel step a lane-dense matmul / elementwise op:
    eye_n = jnp.eye(N, dtype=dt)
    w1_blk = jnp.einsum("ij,ha->ihja", eye_n, w1.astype(dt)).reshape(N * H, N * A)
    b1_blk = jnp.tile(b1.reshape(1, A).astype(dt), (1, N))                  # (1, N*A)
    w2_blk = jnp.einsum("ij,a->iaj", eye_n, w2.reshape(A).astype(dt)).reshape(N * A, N)
    expand = jnp.repeat(eye_n, H, axis=1)                                   # (N, N*H)
    sum_op = jnp.tile(jnp.eye(H, dtype=dt), (N, 1))                         # (N*H, H)

    # Tile sizing: big blocks (amortize per-step pipeline overhead), cdiv grid
    # with zero padding for arbitrary M (padded rows produce finite zeros).
    tm = min(tile_m, _round_up(M, 8))
    Mp = _round_up(M, tm)
    if Mp != M:
        xf = jnp.pad(xf, ((0, Mp - M), (0, 0)))
    grid = Mp // tm

    out = pl.pallas_call(
        _attn_kernel,
        out_shape=jax.ShapeDtypeStruct((Mp, H), dt),
        grid_spec=pltpu.PrefetchScalarGridSpec(
            num_scalar_prefetch=0,
            grid=(grid,),
            in_specs=[
                pl.BlockSpec((tm, N * H), lambda i: (i, 0)),
                pl.BlockSpec((N * H, N * A), lambda i: (0, 0)),
                pl.BlockSpec((1, N * A), lambda i: (0, 0)),
                pl.BlockSpec((N * A, N), lambda i: (0, 0)),
                pl.BlockSpec((N, N * H), lambda i: (0, 0)),
                pl.BlockSpec((N * H, H), lambda i: (0, 0)),
            ],
            out_specs=pl.BlockSpec((tm, H), lambda i: (i, 0)),
        ),
        compiler_params=pltpu.CompilerParams(
            dimension_semantics=("parallel",),
            vmem_limit_bytes=64 * 1024 * 1024,
        ),
    )(xf, w1_blk, b1_blk, w2_blk, expand, sum_op)
    return out[:M].reshape(B, L, H)


def _reference(x, w1, b1, w2, b2):
    # pure-JAX reference of VanillaAttention forward (includes b2)
    h = jnp.maximum(jnp.einsum("blnh,ha->blna", x, w1) + b1[0], 0.0)
    e = jnp.einsum("blna,a->bln", h, w2[:, 0]) + b2[0, 0]
    w = jax.nn.softmax(e, axis=-1)
    return jnp.sum(x * w[..., None], axis=-2)


if __name__ == "__main__":
    B, L, NUM, H, A = 2, 8, 4, 32, 16   # input_size=H, hidden_size=A

    key = jax.random.PRNGKey(0)
    kx, k1, k2, k3, k4, ky = jax.random.split(key, 6)
    x  = jax.random.normal(kx, (B, L, NUM, H), dtype=jnp.float32)
    w1 = jax.random.normal(k1, (H, A), dtype=jnp.float32) * 0.1
    b1 = jax.random.normal(k2, (1, A), dtype=jnp.float32) * 0.1
    w2 = jax.random.normal(k3, (A, 1), dtype=jnp.float32) * 0.1
    b2 = jax.random.normal(k4, (1, 1), dtype=jnp.float32) * 0.1

    out = attn_layer(x, w1, b1, w2, b2)
    jax.block_until_ready(out)
    ref = _reference(x, w1, b1, w2, b2)
    assert out.shape == (B, L, H)
    # approx (EUP) reciprocal in the softmax -> compare at 5e-3
    assert jnp.allclose(out, ref, atol=5e-3, rtol=5e-3)

    # second shape exercises a multi-step grid + non-divisible M (tail padding)
    B2, L2 = 4, 130                      # M = 520 -> padded to 1024, grid = 2
    x2 = jax.random.normal(ky, (B2, L2, NUM, H), dtype=jnp.float32)
    out2 = attn_layer(x2, w1, b1, w2, b2, tile_m=512)
    jax.block_until_ready(out2)
    ref2 = _reference(x2, w1, b1, w2, b2)
    assert out2.shape == (B2, L2, H)
    assert jnp.allclose(out2, ref2, atol=5e-3, rtol=5e-3)

    print("KERNEL_OK")
</pallas_src>

<mosaic_0001>
module attributes {stable_mosaic.version = 11 : i64} {
  func.func @_attn_kernel(%arg0: i32, %arg1: memref<16x128xf32, #tpu.memory_space<vmem>>, %arg2: memref<128x64xf32, #tpu.memory_space<vmem>>, %arg3: memref<1x64xf32, #tpu.memory_space<vmem>>, %arg4: memref<64x4xf32, #tpu.memory_space<vmem>>, %arg5: memref<4x128xf32, #tpu.memory_space<vmem>>, %arg6: memref<128x32xf32, #tpu.memory_space<vmem>>, %arg7: memref<16x32xf32, #tpu.memory_space<vmem>>) attributes {dimension_semantics = [#tpu.dimension_semantics<parallel>], iteration_bounds = array<i64: 1>, scalar_prefetch = 0 : i64, scratch_operands = 0 : i64, tpu.core_type = #tpu.core_type<tc>, window_params = [{transform_indices = @transform_0, window_bounds = array<i64: 16, 128>}, {pipeline_mode = #tpu.pipeline_mode<synchronous>, transform_indices = @transform_1, window_bounds = array<i64: 128, 64>}, {pipeline_mode = #tpu.pipeline_mode<synchronous>, transform_indices = @transform_2, window_bounds = array<i64: 1, 64>}, {pipeline_mode = #tpu.pipeline_mode<synchronous>, transform_indices = @transform_3, window_bounds = array<i64: 64, 4>}, {pipeline_mode = #tpu.pipeline_mode<synchronous>, transform_indices = @transform_4, window_bounds = array<i64: 4, 128>}, {pipeline_mode = #tpu.pipeline_mode<synchronous>, transform_indices = @transform_5, window_bounds = array<i64: 128, 32>}, {transform_indices = @transform_6, window_bounds = array<i64: 16, 32>}]} {
    %c0 = arith.constant 0 : index
    %c0_0 = arith.constant 0 : index
    %0 = vector.load %arg1[%c0, %c0_0] : memref<16x128xf32, #tpu.memory_space<vmem>>, vector<16x128xf32>
    %c0_1 = arith.constant 0 : index
    %c0_2 = arith.constant 0 : index
    %1 = vector.load %arg2[%c0_1, %c0_2] : memref<128x64xf32, #tpu.memory_space<vmem>>, vector<128x64xf32>
    %cst = arith.constant dense<0.000000e+00> : vector<16x64xf32>
    %2 = tpu.matmul %0, %1, %cst {dimension_numbers = #tpu.dot_dimension_numbers<[1], [0], [0], [1], [0, 0, 1, 1], [], []>} : vector<16x128xf32>, vector<128x64xf32>, vector<16x64xf32> -> vector<16x64xf32>
    %c0_3 = arith.constant 0 : index
    %c0_4 = arith.constant 0 : index
    %3 = vector.load %arg3[%c0_3, %c0_4] : memref<1x64xf32, #tpu.memory_space<vmem>>, vector<1x64xf32>
    %4 = vector.broadcast %3 : vector<1x64xf32> to vector<16x64xf32>
    %5 = arith.addf %2, %4 : vector<16x64xf32>
    %cst_5 = arith.constant 0.000000e+00 : f32
    %6 = vector.broadcast %cst_5 : f32 to vector<16x64xf32>
    %7 = arith.maximumf %5, %6 : vector<16x64xf32>
    %c0_6 = arith.constant 0 : index
    %c0_7 = arith.constant 0 : index
    %8 = vector.load %arg4[%c0_6, %c0_7] : memref<64x4xf32, #tpu.memory_space<vmem>>, vector<64x4xf32>
    %cst_8 = arith.constant dense<0.000000e+00> : vector<16x4xf32>
    %9 = tpu.matmul %7, %8, %cst_8 {dimension_numbers = #tpu.dot_dimension_numbers<[1], [0], [0], [1], [0, 0, 1, 1], [], []>} : vector<16x64xf32>, vector<64x4xf32>, vector<16x4xf32> -> vector<16x4xf32>
    %cst_9 = arith.constant dense<0xFF800000> : vector<16xf32>
    %10 = vector.multi_reduction <maximumf>, %9, %cst_9 [1] : vector<16x4xf32> to vector<16xf32>
    %11 = vector.shape_cast %10 : vector<16xf32> to vector<16x1xf32>
    %12 = vector.broadcast %11 : vector<16x1xf32> to vector<16x4xf32>
    %13 = arith.subf %9, %12 : vector<16x4xf32>
    %14 = math.exp %13 : vector<16x4xf32>
    %cst_10 = arith.constant dense<0.000000e+00> : vector<16xf32>
    %15 = vector.multi_reduction <add>, %14, %cst_10 [1] : vector<16x4xf32> to vector<16xf32>
    %16 = vector.shape_cast %15 : vector<16xf32> to vector<16x1xf32>
    %17 = tpu.reciprocal %16 {approx = true} : vector<16x1xf32> -> vector<16x1xf32>
    %18 = vector.broadcast %17 : vector<16x1xf32> to vector<16x4xf32>
    %19 = arith.mulf %14, %18 : vector<16x4xf32>
    %c0_11 = arith.constant 0 : index
    %c0_12 = arith.constant 0 : index
    %20 = vector.load %arg5[%c0_11, %c0_12] : memref<4x128xf32, #tpu.memory_space<vmem>>, vector<4x128xf32>
    %cst_13 = arith.constant dense<0.000000e+00> : vector<16x128xf32>
    %21 = tpu.matmul %19, %20, %cst_13 {dimension_numbers = #tpu.dot_dimension_numbers<[1], [0], [0], [1], [0, 0, 1, 1], [], []>} : vector<16x4xf32>, vector<4x128xf32>, vector<16x128xf32> -> vector<16x128xf32>
    %22 = arith.mulf %0, %21 : vector<16x128xf32>
    %c0_14 = arith.constant 0 : index
    %c0_15 = arith.constant 0 : index
    %23 = vector.load %arg6[%c0_14, %c0_15] : memref<128x32xf32, #tpu.memory_space<vmem>>, vector<128x32xf32>
    %cst_16 = arith.constant dense<0.000000e+00> : vector<16x32xf32>
    %24 = tpu.matmul %22, %23, %cst_16 {dimension_numbers = #tpu.dot_dimension_numbers<[1], [0], [0], [1], [0, 0, 1, 1], [], []>} : vector<16x128xf32>, vector<128x32xf32>, vector<16x32xf32> -> vector<16x32xf32>
    %c0_17 = arith.constant 0 : index
    %c0_18 = arith.constant 0 : index
    %25 = vector.load %arg7[%c0_17, %c0_18] : memref<16x32xf32, #tpu.memory_space<vmem>>, vector<16x32xf32>
    tpu.vector_store %arg7[%c0_17, %c0_18], %24 {strides = array<i32>} : memref<16x32xf32, #tpu.memory_space<vmem>>, vector<16x32xf32>,
    return
  }
  func.func @transform_0(%arg0: i32) -> (i32, i32) {
    %c0_i32 = arith.constant 0 : i32
    %c0_i32_0 = arith.constant 0 : i32
    return %arg0, %c0_i32 : i32, i32
  }
  func.func @transform_1(%arg0: i32) -> (i32, i32) {
    %c0_i32 = arith.constant 0 : i32
    %c0_i32_0 = arith.constant 0 : i32
    %c0_i32_1 = arith.constant 0 : i32
    return %c0_i32, %c0_i32_0 : i32, i32
  }
  func.func @transform_2(%arg0: i32) -> (i32, i32) {
    %c0_i32 = arith.constant 0 : i32
    %c0_i32_0 = arith.constant 0 : i32
    %c0_i32_1 = arith.constant 0 : i32
    return %c0_i32, %c0_i32_0 : i32, i32
  }
  func.func @transform_3(%arg0: i32) -> (i32, i32) {
    %c0_i32 = arith.constant 0 : i32
    %c0_i32_0 = arith.constant 0 : i32
    %c0_i32_1 = arith.constant 0 : i32
    return %c0_i32, %c0_i32_0 : i32, i32
  }
  func.func @transform_4(%arg0: i32) -> (i32, i32) {
    %c0_i32 = arith.constant 0 : i32
    %c0_i32_0 = arith.constant 0 : i32
    %c0_i32_1 = arith.constant 0 : i32
    return %c0_i32, %c0_i32_0 : i32, i32
  }
  func.func @transform_5(%arg0: i32) -> (i32, i32) {
    %c0_i32 = arith.constant 0 : i32
    %c0_i32_0 = arith.constant 0 : i32
    %c0_i32_1 = arith.constant 0 : i32
    return %c0_i32, %c0_i32_0 : i32, i32
  }
  func.func @transform_6(%arg0: i32) -> (i32, i32) {
    %c0_i32 = arith.constant 0 : i32
    %c0_i32_0 = arith.constant 0 : i32
    return %arg0, %c0_i32 : i32, i32
  }
}

</mosaic_0001>

<llo_original>
// kernel: tpu_custom_call.1
$region0: #{tpu_custom_call.1}
  #allocation0 [shape = 'u32[]', space=smem, size = 0x4, offset = 0x4, fixed_abs, tag = 'smem constant byte address 0x4 - core index']
  #allocation1 [shape = 'u32[72,128]{1,0:T(1,128)}', space=vmem, size = 0x9000, scoped, tag = 'internal scratch']
  %s0 = inlined_call_operand.vmem [shape: f32[16,128], index: 0, kind: input, shape index: {}]
  %s1 = inlined_call_operand.vmem [shape: f32[128,64], index: 1, kind: input, shape index: {}]
  %s2 = inlined_call_operand.vmem [shape: f32[1,64], index: 2, kind: input, shape index: {}]
  %s3 = inlined_call_operand.vmem [shape: f32[64,4], index: 3, kind: input, shape index: {}]
  %s4 = inlined_call_operand.vmem [shape: f32[4,128], index: 4, kind: input, shape index: {}]
  %s5 = inlined_call_operand.vmem [shape: f32[128,32], index: 5, kind: input, shape index: {}]
  %s6 = inlined_call_operand.hbm [shape: f32[16,32], index: 6, kind: output, shape index: {}]
  %s7 = sld [smem:[#allocation0]]
  $region34: #{tpu_custom_call.1} parent=0
    _
  %s9 = ssub.s32 1, %s7
  %s10 = scalar_select 0, %s9, %s7
  $region1: #{tpu_custom_call.1} parent=0
    #allocation2 [shape = 'u8[8192]{0}', space=vmem, size = 0x2000, scoped, tag = 'output window, operand 0, single buffered']
    #allocation3 [shape = 's32[1]{0}', space=sflag, size = 0x4, scoped, tag = 'scoped memory for tpu_custom_call.1']
    %11 = vsyncpa [#allocation3], 0
    // Predicated region
    $region2: #{tpu_custom_call.1} parent=1 // pred_check
      _
    $region3: #{tpu_custom_call.1} parent=1 // pred_check_branch
      %13 = sbr.rel (0) target = $region5
    $region4: #{tpu_custom_call.1} parent=1 // pred_region
      _
    $region5: #{tpu_custom_call.1} parent=1 // pred_fallthru
      _
    // Predicated region
    $region6: #{tpu_custom_call.1} parent=1 // pred_check
      _
    $region7: #{tpu_custom_call.1} parent=1 // pred_check_branch
      %15 = sbr.rel (0) target = $region9
    $region8: #{tpu_custom_call.1} parent=1 // pred_region
      _
    $region9: #{tpu_custom_call.1} parent=1 // pred_fallthru
      _
    // Predicated region
    $region10: #{tpu_custom_call.1} parent=1 // pred_check
      _
    $region11: #{tpu_custom_call.1} parent=1 // pred_check_branch
      %17 = sbr.rel (0) target = $region13
    $region12: #{tpu_custom_call.1} parent=1 // pred_region
      _
    $region13: #{tpu_custom_call.1} parent=1 // pred_fallthru
      _
    // Predicated region
    $region14: #{tpu_custom_call.1} parent=1 // pred_check
      _
    $region15: #{tpu_custom_call.1} parent=1 // pred_check_branch
      %19 = sbr.rel (0) target = $region17
    $region16: #{tpu_custom_call.1} parent=1 // pred_region
      _
    $region17: #{tpu_custom_call.1} parent=1 // pred_fallthru
      _
    // Predicated region
    $region18: #{tpu_custom_call.1} parent=1 // pred_check
      _
    $region19: #{tpu_custom_call.1} parent=1 // pred_check_branch
      %21 = sbr.rel (0) target = $region21
    $region20: #{tpu_custom_call.1} parent=1 // pred_region
      _
    $region21: #{tpu_custom_call.1} parent=1 // pred_fallthru
      _
    // Predicated region
    $region22: #{tpu_custom_call.1} parent=1 // pred_check
      _
    $region23: #{tpu_custom_call.1} parent=1 // pred_check_branch
      %23 = sbr.rel (0) target = $region25
    $region24: #{tpu_custom_call.1} parent=1 // pred_region
      _
    $region25: #{tpu_custom_call.1} parent=1 // pred_fallthru
      _
    %v24 = vld [vmem:[%s0] sm:$0xff]
    %v25 = vld [vmem:[%s0 + $0x8] sm:$0xff]
    %v26 = vld [vmem:[%s1] sm:$0xff]
    %v27 = vld [vmem:[%s1 + $0x8] sm:$0xff]
    %v28 = vld [vmem:[%s1 + $0x10] sm:$0xff]
    %v29 = vld [vmem:[%s1 + $0x18] sm:$0xff]
    %v30 = vld [vmem:[%s1 + $0x20] sm:$0xff]
    %v31 = vld [vmem:[%s1 + $0x28] sm:$0xff]
    %v32 = vld [vmem:[%s1 + $0x30] sm:$0xff]
    %v33 = vld [vmem:[%s1 + $0x38] sm:$0xff]
    %v34 = vld [vmem:[%s1 + $0x40] sm:$0xff]
    %v35 = vld [vmem:[%s1 + $0x48] sm:$0xff]
    %v36 = vld [vmem:[%s1 + $0x50] sm:$0xff]
    %v37 = vld [vmem:[%s1 + $0x58] sm:$0xff]
    %v38 = vld [vmem:[%s1 + $0x60] sm:$0xff]
    %v39 = vld [vmem:[%s1 + $0x68] sm:$0xff]
    %v40 = vld [vmem:[%s1 + $0x70] sm:$0xff]
    %v41 = vld [vmem:[%s1 + $0x78] sm:$0xff]
    %v42 = vld [vmem:[%s2] sm:$0x1]
    %v44 = vperm.slane %v42, 0
    %46 = vmatpush.msra.mxu0 %v41
    %47 = vmatpush.msra.mxu0 %v40
    %48 = vmatpush.msra.mxu0 %v39
    %49 = vmatpush.msra.mxu0 %v38
    %50 = vmatpush.msra.mxu0 %v37
    %51 = vmatpush.msra.mxu0 %v36
    %52 = vmatpush.msra.mxu0 %v35
    %53 = vmatpush.msra.mxu0 %v34
    %54 = vmatpush.msra.mxu0 %v33
    %55 = vmatpush.msra.mxu0 %v32
    %56 = vmatpush.msra.mxu0 %v31
    %57 = vmatpush.msra.mxu0 %v30
    %58 = vmatpush.msra.mxu0 %v29
    %59 = vmatpush.msra.mxu0 %v28
    %60 = vmatpush.msra.mxu0 %v27
    %61 = vmatpush.msra.mxu0 %v26
    %62 = vmatmul.f32.gmra.mxu0 %v24
    %v63 = vpop.f32.mrf.mxu0
    %v64 = vadd.f32 %v44, %v63
    %65 = vmatmul.f32.gmra.mxu0 %v25
    %v66 = vpop.f32.mrf.mxu0
    %v67 = vadd.f32 %v44, %v66
    %68 = vdwg.mxu0
    %v69 = vmax.f32 %v64, 0.0
    %v70 = vmax.f32 %v67, 0.0
    %v71 = vld [vmem:[%s3] sm:$0xff]
    %v72 = vld [vmem:[%s3 + $0x8] sm:$0xff]
    %v73 = vld [vmem:[%s3 + $0x10] sm:$0xff]
    %v74 = vld [vmem:[%s3 + $0x18] sm:$0xff]
    %v75 = vld [vmem:[%s3 + $0x20] sm:$0xff]
    %v76 = vld [vmem:[%s3 + $0x28] sm:$0xff]
    %v77 = vld [vmem:[%s3 + $0x30] sm:$0xff]
    %v78 = vld [vmem:[%s3 + $0x38] sm:$0xff]
    %vm79 = vcmask 523264
    %v81 = vsel %vm79, %v69, 0
    %v84 = vsel %vm79, %v70, 0
    %86 = vmatpush.msra.mxu0 0.0
    %87 = vmatpush.msra.mxu0 0.0
    %88 = vmatpush.msra.mxu0 0.0
    %89 = vmatpush.msra.mxu0 0.0
    %90 = vmatpush.msra.mxu0 0.0
    %91 = vmatpush.msra.mxu0 0.0
    %92 = vmatpush.msra.mxu0 0.0
    %93 = vmatpush.msra.mxu0 0.0
    %94 = vmatpush.msra.mxu0 %v78
    %95 = vmatpush.msra.mxu0 %v77
    %96 = vmatpush.msra.mxu0 %v76
    %97 = vmatpush.msra.mxu0 %v75
    %98 = vmatpush.msra.mxu0 %v74
    %99 = vmatpush.msra.mxu0 %v73
    %100 = vmatpush.msra.mxu0 %v72
    %101 = vmatpush.msra.mxu0 %v71
    %102 = vmatmul.f32.gmra.mxu0 %v81
    %v103 = vpop.f32.mrf.mxu0
    %v104 = vadd.f32 0.0, %v103
    %105 = vmatmul.f32.gmra.mxu0 %v84
    %v106 = vpop.f32.mrf.mxu0
    %v107 = vadd.f32 0.0, %v106
    %108 = vdwg.mxu0
    %vm109 = vcmask 31744
    %v110 = vsel %vm109, %v104, -inf
    %111 = vmax.xlane.f32.xlu0 %v110
    %v112 = vpop.xlane.xlu0 %111
    %v113 = vsel %vm109, %v107, -inf
    %114 = vmax.xlane.f32.xlu0 %v113
    %v115 = vpop.xlane.xlu0 %114
    %v116 = vsub.f32 %v104, %v112
    %v117 = vsub.f32 %v107, %v115
    %v118 = vmul.f32 %v116, 1.442695
    %v119 = vpow.pop %v118
    %v120 = vmul.f32 %v117, 1.442695
    %v121 = vpow.pop %v120
    %v122 = vsel %vm109, %v119, 0.0
    %123 = vadd.xlane.f32.xlu0 %v122
    %v124 = vpop.xlane.xlu0 %123
    %v125 = vsel %vm109, %v121, 0.0
    %126 = vadd.xlane.f32.xlu0 %v125
    %v127 = vpop.xlane.xlu0 %126
    %v128 = vrcp.pop %v124
    %v129 = vrcp.pop %v127
    %v130 = vmul.f32 %v119, %v128
    %v131 = vmul.f32 %v121, %v129
    %v132 = vld [vmem:[%s4] sm:$0xf]
    %v134 = vsel %vm109, %v130, 0
    %v137 = vsel %vm109, %v131, 0
    %vm139 = vcmask 1043456
    %v141 = vsel %vm139, %v132, 0
    %143 = vmatpush.msra.mxu0 0.0
    %144 = vmatpush.msra.mxu0 0.0
    %145 = vmatpush.msra.mxu0 0.0
    %146 = vmatpush.msra.mxu0 0.0
    %147 = vmatpush.msra.mxu0 0.0
    %148 = vmatpush.msra.mxu0 0.0
    %149 = vmatpush.msra.mxu0 0.0
    %150 = vmatpush.msra.mxu0 0.0
    %151 = vmatpush.msra.mxu0 0.0
    %152 = vmatpush.msra.mxu0 0.0
    %153 = vmatpush.msra.mxu0 0.0
    %154 = vmatpush.msra.mxu0 0.0
    %155 = vmatpush.msra.mxu0 0.0
    %156 = vmatpush.msra.mxu0 0.0
    %157 = vmatpush.msra.mxu0 0.0
    %158 = vmatpush.msra.mxu0 %v141
    %159 = vmatmul.f32.gmra.mxu0 %v134
    %v160 = vpop.f32.mrf.mxu0
    %v161 = vadd.f32 0.0, %v160
    %162 = vmatmul.f32.gmra.mxu0 %v137
    %v163 = vpop.f32.mrf.mxu0
    %v164 = vadd.f32 0.0, %v163
    %165 = vdwg.mxu0
    %v166 = vmul.f32 %v24, %v161
    %v167 = vmul.f32 %v25, %v164
    %v168 = vld [vmem:[%s5] sm:$0xff]
    %v169 = vld [vmem:[%s5 + $0x8] sm:$0xff]
    %v170 = vld [vmem:[%s5 + $0x10] sm:$0xff]
    %v171 = vld [vmem:[%s5 + $0x18] sm:$0xff]
    %v172 = vld [vmem:[%s5 + $0x20] sm:$0xff]
    %v173 = vld [vmem:[%s5 + $0x28] sm:$0xff]
    %v174 = vld [vmem:[%s5 + $0x30] sm:$0xff]
    %v175 = vld [vmem:[%s5 + $0x38] sm:$0xff]
    %v176 = vld [vmem:[%s5 + $0x40] sm:$0xff]
    %v177 = vld [vmem:[%s5 + $0x48] sm:$0xff]
    %v178 = vld [vmem:[%s5 + $0x50] sm:$0xff]
    %v179 = vld [vmem:[%s5 + $0x58] sm:$0xff]
    %v180 = vld [vmem:[%s5 + $0x60] sm:$0xff]
    %v181 = vld [vmem:[%s5 + $0x68] sm:$0xff]
    %v182 = vld [vmem:[%s5 + $0x70] sm:$0xff]
    %v183 = vld [vmem:[%s5 + $0x78] sm:$0xff]
    %184 = vmatpush.msra.mxu0 %v183
    %185 = vmatpush.msra.mxu0 %v182
    %186 = vmatpush.msra.mxu0 %v181
    %187 = vmatpush.msra.mxu0 %v180
    %188 = vmatpush.msra.mxu0 %v179
    %189 = vmatpush.msra.mxu0 %v178
    %190 = vmatpush.msra.mxu0 %v177
    %191 = vmatpush.msra.mxu0 %v176
    %192 = vmatpush.msra.mxu0 %v175
    %193 = vmatpush.msra.mxu0 %v174
    %194 = vmatpush.msra.mxu0 %v173
    %195 = vmatpush.msra.mxu0 %v172
    %196 = vmatpush.msra.mxu0 %v171
    %197 = vmatpush.msra.mxu0 %v170
    %198 = vmatpush.msra.mxu0 %v169
    %199 = vmatpush.msra.mxu0 %v168
    %200 = vmatmul.f32.gmra.mxu0 %v166
    %v201 = vpop.f32.mrf.mxu0
    %v202 = vadd.f32 0.0, %v201
    %203 = vmatmul.f32.gmra.mxu0 %v167
    %v204 = vpop.f32.mrf.mxu0
    %v205 = vadd.f32 0.0, %v204
    %206 = vdwg.mxu0
    %vm207 = vcmask 261120
    %208 = vst.msk [vmem:[#allocation2] sm:$0xff] %vm207, %v202
    %209 = vst.msk [vmem:[#allocation2 + $0x8] sm:$0xff] %vm207, %v205
    // Predicated region
    $region26: #{tpu_custom_call.1} parent=1 // pred_check
      _
    $region27: #{tpu_custom_call.1} parent=1 // pred_check_branch
      %211 = sbr.rel (0) target = $region29
    $region28: #{tpu_custom_call.1} parent=1 // pred_region
      %213 = vsyncadd [#allocation3], 0
      %s214 = sshll.u32 [#allocation2], 4
      %s215 = int_to_ptr.vmem [resolvable:$true] %s214
      %s216 = sshll.u32 %s6, 4
      %s217 = int_to_ptr.hbm [resolvable:$true] %s216
      %222 = dma.vmem_to_hbm [thread:$0]  %s215, 256, %s217, [#allocation3], 128, 128, 8
    $region29: #{tpu_custom_call.1} parent=1 // pred_fallthru
      _
    // Predicated region
    $region30: #{tpu_custom_call.1} parent=1 // pred_check
      _
    $region31: #{tpu_custom_call.1} parent=1 // pred_check_branch
      %224 = sbr.rel (0) target = $region33
    $region32: #{tpu_custom_call.1} parent=1 // pred_region
      %226 = dma.done [#allocation3], 256
    $region33: #{tpu_custom_call.1} parent=1 // pred_fallthru
      _
    %227 = vsyncpa [#allocation3], 1

</llo_original>
